<compile_context>
chip_gen: v5e
topology: v5e:2x2
jax: 0.10.0
libtpu: 0.0.40
codegen_flags: <defaults>
</compile_context>

<pallas_src>
import math

import jax
import jax.numpy as jnp
from jax.experimental import pallas as pl
from jax.experimental.pallas import tpu as pltpu

_LANES = 128  # pad the output feature dim to a full lane width


def _round_up(v, m):
    return ((v + m - 1) // m) * m


def _mlp_kernel(x_ref, w1_ref, b1_ref, w2_ref, b2_ref, w3_ref, b3_ref, o_ref):
    # fc1 + ReLU: cast x to bf16 in-register (free under the DMA) and run the
    # K=1024 matmul on the bf16 MXU path with f32 accumulation.
    x_bf16 = x_ref[...].astype(jnp.bfloat16)
    h1 = jnp.dot(x_bf16, w1_ref[...], preferred_element_type=jnp.float32)
    h1 = jnp.maximum(h1 + b1_ref[...], 0.0)
    # fc2 + ReLU (tiny, f32).
    h2 = jnp.dot(h1, w2_ref[...], preferred_element_type=jnp.float32)
    h2 = jnp.maximum(h2 + b2_ref[...], 0.0)
    # fc3 (logits, lane-padded to 128; no activation).
    out = jnp.dot(h2, w3_ref[...], preferred_element_type=jnp.float32)
    o_ref[...] = (out + b3_ref[...]).astype(o_ref.dtype)


def custom_mlp8_forward(x, params):
    """x: (N, C, H, W) float32 NCHW. Returns (N, num_classes) float32."""
    w1, b1, w2, b2, w3, b3 = params
    n = x.shape[0]
    prod_size = math.prod(x.shape[1:])
    num_classes = w3.shape[1]

    # Flatten exactly like torch's .view(-1, prod_size). No cast, no pad:
    # x goes to the kernel in native f32 and is read from HBM exactly once.
    x2d = x.reshape(n, prod_size)

    # Batch tile: up to 1024 rows, multiple of 16 (bf16 sublane packing),
    # sized ~n/2 so the grid has >=2 steps whenever the batch allows it
    # (keeps both TensorCores busy on v7x via the "parallel" axis).
    tm = min(1024, _round_up(max((n + 1) // 2, 1), 16))
    grid = (pl.cdiv(n, tm),)

    # W1 is tiny (prod_size x 32) and resident -> cast once in the wrapper.
    w1_bf16 = w1.astype(jnp.bfloat16)

    # Lane-dense output: pad fc3 weights/bias from num_classes -> 128.
    out_pad = max(_LANES, _round_up(num_classes, _LANES))
    w3p = jnp.pad(w3, ((0, 0), (0, out_pad - num_classes)))
    b3p = jnp.pad(b3, ((0, 0), (0, out_pad - num_classes)))

    flops = 2 * n * (prod_size * 32 + 32 * 16 + 16 * out_pad)
    bytes_accessed = (
        x2d.size * 4
        + w1_bf16.size * 2
        + (b1.size + w2.size + b2.size + w3p.size + b3p.size) * 4
        + n * out_pad * 4
    )

    out = pl.pallas_call(
        _mlp_kernel,
        out_shape=jax.ShapeDtypeStruct((n, out_pad), jnp.float32),
        grid=grid,
        in_specs=[
            pl.BlockSpec((tm, prod_size), lambda i: (i, 0)),   # x tile (f32)
            pl.BlockSpec(w1_bf16.shape, lambda i: (0, 0)),     # W1 (resident)
            pl.BlockSpec(b1.shape, lambda i: (0, 0)),
            pl.BlockSpec(w2.shape, lambda i: (0, 0)),
            pl.BlockSpec(b2.shape, lambda i: (0, 0)),
            pl.BlockSpec(w3p.shape, lambda i: (0, 0)),
            pl.BlockSpec(b3p.shape, lambda i: (0, 0)),
        ],
        out_specs=pl.BlockSpec((tm, out_pad), lambda i: (i, 0)),
        compiler_params=pltpu.CompilerParams(
            dimension_semantics=("parallel",),
            # tm=1024 f32 x tile double-buffered (~8 MiB) + output; bump the
            # scoped limit so v5e (16 MiB default) takes the same tile size.
            vmem_limit_bytes=64 * 1024 * 1024,
        ),
        cost_estimate=pl.CostEstimate(
            flops=flops, transcendentals=0, bytes_accessed=bytes_accessed
        ),
    )(x2d, w1_bf16, b1, w2, b2, w3p, b3p)

    # TODO(synk): for very large prod_size (e.g. 3x224x224), add a K-tiled
    # "arbitrary" grid axis with an f32 VMEM accumulator; and on v7x, fp8
    # quantization of x/W1 for fc1 would halve the byte stream again.
    return out[:, :num_classes]


def init_params(key, prod_size, num_classes=10):
    """nn.Linear-style U(-1/sqrt(fan_in), +1/sqrt(fan_in)) init.

    Weights stored transposed vs PyTorch (shape (in, out)) so the kernel can
    do x @ W directly.
    """
    dims = [(prod_size, 32), (32, 16), (16, num_classes)]
    params = []
    for fan_in, fan_out in dims:
        key, kw, kb = jax.random.split(key, 3)
        bound = 1.0 / math.sqrt(fan_in)
        w = jax.random.uniform(kw, (fan_in, fan_out), jnp.float32, -bound, bound)
        b = jax.random.uniform(kb, (1, fan_out), jnp.float32, -bound, bound)
        params += [w, b]
    return tuple(params)


def reference_forward(x, params):
    w1, b1, w2, b2, w3, b3 = params
    x2d = x.reshape(x.shape[0], -1)
    h1 = jnp.maximum(x2d @ w1 + b1, 0.0)
    h2 = jnp.maximum(h1 @ w2 + b2, 0.0)
    return h2 @ w3 + b3


if __name__ == "__main__":
    # img_size = (4, 16, 16) -> prod_size = 1024; batch = 2; num_classes = 10
    key = jax.random.PRNGKey(0)
    k_x, k_p = jax.random.split(key)

    img_size = (4, 16, 16)
    prod_size = math.prod(img_size)
    num_classes = 10
    batch = 2

    x = jax.random.normal(k_x, (batch,) + img_size, jnp.float32)
    params = init_params(k_p, prod_size, num_classes)

    out = custom_mlp8_forward(x, params)
    out = jax.block_until_ready(out)

    ref = reference_forward(x, params)
    assert out.shape == (batch, num_classes), out.shape
    # fc1 runs in bf16 on the MXU (f32 accumulation) -> looser tolerance.
    assert jnp.allclose(out, ref, atol=2e-2, rtol=2e-2), "mismatch vs reference"

    print("KERNEL_OK")
</pallas_src>

<mosaic_0001>
module attributes {stable_mosaic.version = 11 : i64} {
  func.func @_mlp_kernel(%arg0: i32, %arg1: memref<16x1024xf32, #tpu.memory_space<vmem>>, %arg2: memref<1024x32xbf16, #tpu.memory_space<vmem>>, %arg3: memref<1x32xf32, #tpu.memory_space<vmem>>, %arg4: memref<32x16xf32, #tpu.memory_space<vmem>>, %arg5: memref<1x16xf32, #tpu.memory_space<vmem>>, %arg6: memref<16x128xf32, #tpu.memory_space<vmem>>, %arg7: memref<1x128xf32, #tpu.memory_space<vmem>>, %arg8: memref<16x128xf32, #tpu.memory_space<vmem>>) attributes {dimension_semantics = [#tpu.dimension_semantics<parallel>], iteration_bounds = array<i64: 1>, scalar_prefetch = 0 : i64, scratch_operands = 0 : i64, tpu.core_type = #tpu.core_type<tc>, window_params = [{transform_indices = @transform_0, window_bounds = array<i64: 16, 1024>}, {pipeline_mode = #tpu.pipeline_mode<synchronous>, transform_indices = @transform_1, window_bounds = array<i64: 1024, 32>}, {pipeline_mode = #tpu.pipeline_mode<synchronous>, transform_indices = @transform_2, window_bounds = array<i64: 1, 32>}, {pipeline_mode = #tpu.pipeline_mode<synchronous>, transform_indices = @transform_3, window_bounds = array<i64: 32, 16>}, {pipeline_mode = #tpu.pipeline_mode<synchronous>, transform_indices = @transform_4, window_bounds = array<i64: 1, 16>}, {pipeline_mode = #tpu.pipeline_mode<synchronous>, transform_indices = @transform_5, window_bounds = array<i64: 16, 128>}, {pipeline_mode = #tpu.pipeline_mode<synchronous>, transform_indices = @transform_6, window_bounds = array<i64: 1, 128>}, {transform_indices = @transform_7, window_bounds = array<i64: 16, 128>}]} {
    %c0 = arith.constant 0 : index
    %c0_0 = arith.constant 0 : index
    %0 = vector.load %arg1[%c0, %c0_0] : memref<16x1024xf32, #tpu.memory_space<vmem>>, vector<16x1024xf32>
    %1 = arith.truncf %0 : vector<16x1024xf32> to vector<16x1024xbf16>
    %c0_1 = arith.constant 0 : index
    %c0_2 = arith.constant 0 : index
    %2 = vector.load %arg2[%c0_1, %c0_2] : memref<1024x32xbf16, #tpu.memory_space<vmem>>, vector<1024x32xbf16>
    %cst = arith.constant dense<0.000000e+00> : vector<16x32xf32>
    %3 = tpu.matmul %1, %2, %cst {dimension_numbers = #tpu.dot_dimension_numbers<[1], [0], [0], [1], [0, 0, 1, 1], [], []>} : vector<16x1024xbf16>, vector<1024x32xbf16>, vector<16x32xf32> -> vector<16x32xf32>
    %c0_3 = arith.constant 0 : index
    %c0_4 = arith.constant 0 : index
    %4 = vector.load %arg3[%c0_3, %c0_4] : memref<1x32xf32, #tpu.memory_space<vmem>>, vector<1x32xf32>
    %5 = vector.broadcast %4 : vector<1x32xf32> to vector<16x32xf32>
    %6 = arith.addf %3, %5 : vector<16x32xf32>
    %cst_5 = arith.constant 0.000000e+00 : f32
    %7 = vector.broadcast %cst_5 : f32 to vector<16x32xf32>
    %8 = arith.maximumf %6, %7 : vector<16x32xf32>
    %c0_6 = arith.constant 0 : index
    %c0_7 = arith.constant 0 : index
    %9 = vector.load %arg4[%c0_6, %c0_7] : memref<32x16xf32, #tpu.memory_space<vmem>>, vector<32x16xf32>
    %cst_8 = arith.constant dense<0.000000e+00> : vector<16x16xf32>
    %10 = tpu.matmul %8, %9, %cst_8 {dimension_numbers = #tpu.dot_dimension_numbers<[1], [0], [0], [1], [0, 0, 1, 1], [], []>} : vector<16x32xf32>, vector<32x16xf32>, vector<16x16xf32> -> vector<16x16xf32>
    %c0_9 = arith.constant 0 : index
    %c0_10 = arith.constant 0 : index
    %11 = vector.load %arg5[%c0_9, %c0_10] : memref<1x16xf32, #tpu.memory_space<vmem>>, vector<1x16xf32>
    %12 = vector.broadcast %11 : vector<1x16xf32> to vector<16x16xf32>
    %13 = arith.addf %10, %12 : vector<16x16xf32>
    %cst_11 = arith.constant 0.000000e+00 : f32
    %14 = vector.broadcast %cst_11 : f32 to vector<16x16xf32>
    %15 = arith.maximumf %13, %14 : vector<16x16xf32>
    %c0_12 = arith.constant 0 : index
    %c0_13 = arith.constant 0 : index
    %16 = vector.load %arg6[%c0_12, %c0_13] : memref<16x128xf32, #tpu.memory_space<vmem>>, vector<16x128xf32>
    %cst_14 = arith.constant dense<0.000000e+00> : vector<16x128xf32>
    %17 = tpu.matmul %15, %16, %cst_14 {dimension_numbers = #tpu.dot_dimension_numbers<[1], [0], [0], [1], [0, 0, 1, 1], [], []>} : vector<16x16xf32>, vector<16x128xf32>, vector<16x128xf32> -> vector<16x128xf32>
    %c0_15 = arith.constant 0 : index
    %c0_16 = arith.constant 0 : index
    %18 = vector.load %arg7[%c0_15, %c0_16] : memref<1x128xf32, #tpu.memory_space<vmem>>, vector<1x128xf32>
    %19 = vector.broadcast %18 : vector<1x128xf32> to vector<16x128xf32>
    %20 = arith.addf %17, %19 : vector<16x128xf32>
    %c0_17 = arith.constant 0 : index
    %c0_18 = arith.constant 0 : index
    %21 = vector.load %arg8[%c0_17, %c0_18] : memref<16x128xf32, #tpu.memory_space<vmem>>, vector<16x128xf32>
    tpu.vector_store %arg8[%c0_17, %c0_18], %20 {strides = array<i32>} : memref<16x128xf32, #tpu.memory_space<vmem>>, vector<16x128xf32>,
    return
  }
  func.func @transform_0(%arg0: i32) -> (i32, i32) {
    %c0_i32 = arith.constant 0 : i32
    %c0_i32_0 = arith.constant 0 : i32
    return %arg0, %c0_i32 : i32, i32
  }
  func.func @transform_1(%arg0: i32) -> (i32, i32) {
    %c0_i32 = arith.constant 0 : i32
    %c0_i32_0 = arith.constant 0 : i32
    %c0_i32_1 = arith.constant 0 : i32
    return %c0_i32, %c0_i32_0 : i32, i32
  }
  func.func @transform_2(%arg0: i32) -> (i32, i32) {
    %c0_i32 = arith.constant 0 : i32
    %c0_i32_0 = arith.constant 0 : i32
    %c0_i32_1 = arith.constant 0 : i32
    return %c0_i32, %c0_i32_0 : i32, i32
  }
  func.func @transform_3(%arg0: i32) -> (i32, i32) {
    %c0_i32 = arith.constant 0 : i32
    %c0_i32_0 = arith.constant 0 : i32
    %c0_i32_1 = arith.constant 0 : i32
    return %c0_i32, %c0_i32_0 : i32, i32
  }
  func.func @transform_4(%arg0: i32) -> (i32, i32) {
    %c0_i32 = arith.constant 0 : i32
    %c0_i32_0 = arith.constant 0 : i32
    %c0_i32_1 = arith.constant 0 : i32
    return %c0_i32, %c0_i32_0 : i32, i32
  }
  func.func @transform_5(%arg0: i32) -> (i32, i32) {
    %c0_i32 = arith.constant 0 : i32
    %c0_i32_0 = arith.constant 0 : i32
    %c0_i32_1 = arith.constant 0 : i32
    return %c0_i32, %c0_i32_0 : i32, i32
  }
  func.func @transform_6(%arg0: i32) -> (i32, i32) {
    %c0_i32 = arith.constant 0 : i32
    %c0_i32_0 = arith.constant 0 : i32
    %c0_i32_1 = arith.constant 0 : i32
    return %c0_i32, %c0_i32_0 : i32, i32
  }
  func.func @transform_7(%arg0: i32) -> (i32, i32) {
    %c0_i32 = arith.constant 0 : i32
    %c0_i32_0 = arith.constant 0 : i32
    return %arg0, %c0_i32 : i32, i32
  }
}

</mosaic_0001>

<llo_original>
// kernel: tpu_custom_call.1
$region0: #{tpu_custom_call.1}
  #allocation0 [shape = 'u32[]', space=smem, size = 0x4, offset = 0x4, fixed_abs, tag = 'smem constant byte address 0x4 - core index']
  #allocation1 [shape = 'u32[72,128]{1,0:T(1,128)}', space=vmem, size = 0x9000, scoped, tag = 'internal scratch']
  %s0 = inlined_call_operand.vmem [shape: f32[2,1024], index: 0, kind: input, shape index: {}]
  %s1 = inlined_call_operand.vmem [shape: bf16[1024,32], index: 1, kind: input, shape index: {}]
  %s2 = inlined_call_operand.vmem [shape: f32[1,32], index: 2, kind: input, shape index: {}]
  %s3 = inlined_call_operand.vmem [shape: f32[32,16], index: 3, kind: input, shape index: {}]
  %s4 = inlined_call_operand.vmem [shape: f32[1,16], index: 4, kind: input, shape index: {}]
  %s5 = inlined_call_operand.vmem [shape: f32[16,128], index: 5, kind: input, shape index: {}]
  %s6 = inlined_call_operand.vmem [shape: f32[1,128], index: 6, kind: input, shape index: {}]
  %s7 = inlined_call_operand.hbm [shape: f32[2,128], index: 7, kind: output, shape index: {}]
  %s8 = sld [smem:[#allocation0]]
  $region38: #{tpu_custom_call.1} parent=0
    _
  %s10 = ssub.s32 1, %s8
  %s11 = scalar_select 0, %s10, %s8
  $region1: #{tpu_custom_call.1} parent=0
    #allocation2 [shape = 'u8[8192]{0}', space=vmem, size = 0x2000, scoped, tag = 'output window, operand 0, single buffered']
    #allocation3 [shape = 's32[1]{0}', space=sflag, size = 0x4, scoped, tag = 'scoped memory for tpu_custom_call.1']
    %12 = vsyncpa [#allocation3], 0
    // Predicated region
    $region2: #{tpu_custom_call.1} parent=1 // pred_check
      _
    $region3: #{tpu_custom_call.1} parent=1 // pred_check_branch
      %14 = sbr.rel (0) target = $region5
    $region4: #{tpu_custom_call.1} parent=1 // pred_region
      _
    $region5: #{tpu_custom_call.1} parent=1 // pred_fallthru
      _
    // Predicated region
    $region6: #{tpu_custom_call.1} parent=1 // pred_check
      _
    $region7: #{tpu_custom_call.1} parent=1 // pred_check_branch
      %16 = sbr.rel (0) target = $region9
    $region8: #{tpu_custom_call.1} parent=1 // pred_region
      _
    $region9: #{tpu_custom_call.1} parent=1 // pred_fallthru
      _
    // Predicated region
    $region10: #{tpu_custom_call.1} parent=1 // pred_check
      _
    $region11: #{tpu_custom_call.1} parent=1 // pred_check_branch
      %18 = sbr.rel (0) target = $region13
    $region12: #{tpu_custom_call.1} parent=1 // pred_region
      _
    $region13: #{tpu_custom_call.1} parent=1 // pred_fallthru
      _
    // Predicated region
    $region14: #{tpu_custom_call.1} parent=1 // pred_check
      _
    $region15: #{tpu_custom_call.1} parent=1 // pred_check_branch
      %20 = sbr.rel (0) target = $region17
    $region16: #{tpu_custom_call.1} parent=1 // pred_region
      _
    $region17: #{tpu_custom_call.1} parent=1 // pred_fallthru
      _
    // Predicated region
    $region18: #{tpu_custom_call.1} parent=1 // pred_check
      _
    $region19: #{tpu_custom_call.1} parent=1 // pred_check_branch
      %22 = sbr.rel (0) target = $region21
    $region20: #{tpu_custom_call.1} parent=1 // pred_region
      _
    $region21: #{tpu_custom_call.1} parent=1 // pred_fallthru
      _
    // Predicated region
    $region22: #{tpu_custom_call.1} parent=1 // pred_check
      _
    $region23: #{tpu_custom_call.1} parent=1 // pred_check_branch
      %24 = sbr.rel (0) target = $region25
    $region24: #{tpu_custom_call.1} parent=1 // pred_region
      _
    $region25: #{tpu_custom_call.1} parent=1 // pred_fallthru
      _
    // Predicated region
    $region26: #{tpu_custom_call.1} parent=1 // pred_check
      _
    $region27: #{tpu_custom_call.1} parent=1 // pred_check_branch
      %26 = sbr.rel (0) target = $region29
    $region28: #{tpu_custom_call.1} parent=1 // pred_region
      _
    $region29: #{tpu_custom_call.1} parent=1 // pred_fallthru
      _
    %v27 = vld [vmem:[%s0] sm:$0xff]
    %v28 = vld [vmem:[%s0 + $0x8] sm:$0xff]
    %v29 = vld [vmem:[%s0 + $0x10] sm:$0xff]
    %v30 = vld [vmem:[%s0 + $0x18] sm:$0xff]
    %v31 = vld [vmem:[%s0 + $0x20] sm:$0xff]
    %v32 = vld [vmem:[%s0 + $0x28] sm:$0xff]
    %v33 = vld [vmem:[%s0 + $0x30] sm:$0xff]
    %v34 = vld [vmem:[%s0 + $0x38] sm:$0xff]
    %v35 = vld [vmem:[%s0 + $0x40] sm:$0xff]
    %v36 = vld [vmem:[%s0 + $0x48] sm:$0xff]
    %v37 = vld [vmem:[%s0 + $0x50] sm:$0xff]
    %v38 = vld [vmem:[%s0 + $0x58] sm:$0xff]
    %v39 = vld [vmem:[%s0 + $0x60] sm:$0xff]
    %v40 = vld [vmem:[%s0 + $0x68] sm:$0xff]
    %v41 = vld [vmem:[%s0 + $0x70] sm:$0xff]
    %v42 = vld [vmem:[%s0 + $0x78] sm:$0xff]
    %59 = vst [vmem:[#allocation1] ss:$4 sm:$0xff] %v27
    %s60 = scalar_lea.vmem [#allocation1], 1
    %61 = vst [vmem:[%s60] ss:$4 sm:$0xff] %v29
    %s62 = scalar_lea.vmem [#allocation1], 2
    %63 = vst [vmem:[%s62] ss:$4 sm:$0xff] %v31
    %s64 = scalar_lea.vmem [#allocation1], 3
    %65 = vst [vmem:[%s64] ss:$4 sm:$0xff] %v33
    %s66 = scalar_lea.vmem [#allocation1], 32
    %67 = vst [vmem:[%s66] ss:$4 sm:$0xff] %v28
    %s68 = scalar_lea.vmem [#allocation1], 33
    %69 = vst [vmem:[%s68] ss:$4 sm:$0xff] %v30
    %s70 = scalar_lea.vmem [#allocation1], 34
    %71 = vst [vmem:[%s70] ss:$4 sm:$0xff] %v32
    %s72 = scalar_lea.vmem [#allocation1], 35
    %73 = vst [vmem:[%s72] ss:$4 sm:$0xff] %v34
    %v74 = vld.sshfl [vmem:[#allocation1] sm:$0xff pattern:$0x73625140]
    %v75 = vld.sshfl [vmem:[#allocation1 + $0x8] sm:$0xff pattern:$0x73625140]
    %v76 = vld.sshfl [vmem:[#allocation1 + $0x10] sm:$0xff pattern:$0x73625140]
    %v77 = vld.sshfl [vmem:[#allocation1 + $0x18] sm:$0xff pattern:$0x73625140]
    %v78 = vld.sshfl [vmem:[#allocation1 + $0x20] sm:$0xff pattern:$0x73625140]
    %v79 = vld.sshfl [vmem:[#allocation1 + $0x28] sm:$0xff pattern:$0x73625140]
    %v80 = vld.sshfl [vmem:[#allocation1 + $0x30] sm:$0xff pattern:$0x73625140]
    %v81 = vld.sshfl [vmem:[#allocation1 + $0x38] sm:$0xff pattern:$0x73625140]
    %82 = vst [vmem:[#allocation1] ss:$4 sm:$0xff] %v35
    %83 = vst [vmem:[%s60] ss:$4 sm:$0xff] %v37
    %84 = vst [vmem:[%s62] ss:$4 sm:$0xff] %v39
    %85 = vst [vmem:[%s64] ss:$4 sm:$0xff] %v41
    %86 = vst [vmem:[%s66] ss:$4 sm:$0xff] %v36
    %87 = vst [vmem:[%s68] ss:$4 sm:$0xff] %v38
    %88 = vst [vmem:[%s70] ss:$4 sm:$0xff] %v40
    %89 = vst [vmem:[%s72] ss:$4 sm:$0xff] %v42
    %v90 = vld.sshfl [vmem:[#allocation1] sm:$0xff pattern:$0x73625140]
    %v91 = vld.sshfl [vmem:[#allocation1 + $0x8] sm:$0xff pattern:$0x73625140]
    %v92 = vld.sshfl [vmem:[#allocation1 + $0x10] sm:$0xff pattern:$0x73625140]
    %v93 = vld.sshfl [vmem:[#allocation1 + $0x18] sm:$0xff pattern:$0x73625140]
    %v94 = vld.sshfl [vmem:[#allocation1 + $0x20] sm:$0xff pattern:$0x73625140]
    %v95 = vld.sshfl [vmem:[#allocation1 + $0x28] sm:$0xff pattern:$0x73625140]
    %v96 = vld.sshfl [vmem:[#allocation1 + $0x30] sm:$0xff pattern:$0x73625140]
    %v97 = vld.sshfl [vmem:[#allocation1 + $0x38] sm:$0xff pattern:$0x73625140]
    %v114 = vpack.c.bf16 %v90, %v74
    %v115 = vpack.c.bf16 %v91, %v75
    %v116 = vpack.c.bf16 %v92, %v76
    %v117 = vpack.c.bf16 %v93, %v77
    %v118 = vpack.c.bf16 %v94, %v78
    %v119 = vpack.c.bf16 %v95, %v79
    %v120 = vpack.c.bf16 %v96, %v80
    %v121 = vpack.c.bf16 %v97, %v81
    %v122 = vld [vmem:[%s1] sm:$0xf]
    %v123 = vld [vmem:[%s1 + $0x4] sm:$0xf]
    %v124 = vld [vmem:[%s1 + $0x8] sm:$0xf]
    %v125 = vld [vmem:[%s1 + $0xc] sm:$0xf]
    %v126 = vld [vmem:[%s1 + $0x10] sm:$0xf]
    %v127 = vld [vmem:[%s1 + $0x14] sm:$0xf]
    %v128 = vld [vmem:[%s1 + $0x18] sm:$0xf]
    %v129 = vld [vmem:[%s1 + $0x1c] sm:$0xf]
    %v130 = vld [vmem:[%s1 + $0x20] sm:$0xf]
    %v131 = vld [vmem:[%s1 + $0x24] sm:$0xf]
    %v132 = vld [vmem:[%s1 + $0x28] sm:$0xf]
    %v133 = vld [vmem:[%s1 + $0x2c] sm:$0xf]
    %v134 = vld [vmem:[%s1 + $0x30] sm:$0xf]
    %v135 = vld [vmem:[%s1 + $0x34] sm:$0xf]
    %v136 = vld [vmem:[%s1 + $0x38] sm:$0xf]
    %v137 = vld [vmem:[%s1 + $0x3c] sm:$0xf]
    %v138 = vld [vmem:[%s1 + $0x40] sm:$0xf]
    %v139 = vld [vmem:[%s1 + $0x44] sm:$0xf]
    %v140 = vld [vmem:[%s1 + $0x48] sm:$0xf]
    %v141 = vld [vmem:[%s1 + $0x4c] sm:$0xf]
    %v142 = vld [vmem:[%s1 + $0x50] sm:$0xf]
    %v143 = vld [vmem:[%s1 + $0x54] sm:$0xf]
    %v144 = vld [vmem:[%s1 + $0x58] sm:$0xf]
    %v145 = vld [vmem:[%s1 + $0x5c] sm:$0xf]
    %v146 = vld [vmem:[%s1 + $0x60] sm:$0xf]
    %v147 = vld [vmem:[%s1 + $0x64] sm:$0xf]
    %v148 = vld [vmem:[%s1 + $0x68] sm:$0xf]
    %v149 = vld [vmem:[%s1 + $0x6c] sm:$0xf]
    %v150 = vld [vmem:[%s1 + $0x70] sm:$0xf]
    %v151 = vld [vmem:[%s1 + $0x74] sm:$0xf]
    %v152 = vld [vmem:[%s1 + $0x78] sm:$0xf]
    %v153 = vld [vmem:[%s1 + $0x7c] sm:$0xf]
    %v154 = vld [vmem:[%s1 + $0x80] sm:$0xf]
    %v155 = vld [vmem:[%s1 + $0x84] sm:$0xf]
    %v156 = vld [vmem:[%s1 + $0x88] sm:$0xf]
    %v157 = vld [vmem:[%s1 + $0x8c] sm:$0xf]
    %v158 = vld [vmem:[%s1 + $0x90] sm:$0xf]
    %v159 = vld [vmem:[%s1 + $0x94] sm:$0xf]
    %v160 = vld [vmem:[%s1 + $0x98] sm:$0xf]
    %v161 = vld [vmem:[%s1 + $0x9c] sm:$0xf]
    %v162 = vld [vmem:[%s1 + $0xa0] sm:$0xf]
    %v163 = vld [vmem:[%s1 + $0xa4] sm:$0xf]
    %v164 = vld [vmem:[%s1 + $0xa8] sm:$0xf]
    %v165 = vld [vmem:[%s1 + $0xac] sm:$0xf]
    %v166 = vld [vmem:[%s1 + $0xb0] sm:$0xf]
    %v167 = vld [vmem:[%s1 + $0xb4] sm:$0xf]
    %v168 = vld [vmem:[%s1 + $0xb8] sm:$0xf]
    %v169 = vld [vmem:[%s1 + $0xbc] sm:$0xf]
    %v170 = vld [vmem:[%s1 + $0xc0] sm:$0xf]
    %v171 = vld [vmem:[%s1 + $0xc4] sm:$0xf]
    %v172 = vld [vmem:[%s1 + $0xc8] sm:$0xf]
    %v173 = vld [vmem:[%s1 + $0xcc] sm:$0xf]
    %v174 = vld [vmem:[%s1 + $0xd0] sm:$0xf]
    %v175 = vld [vmem:[%s1 + $0xd4] sm:$0xf]
    %v176 = vld [vmem:[%s1 + $0xd8] sm:$0xf]
    %v177 = vld [vmem:[%s1 + $0xdc] sm:$0xf]
    %v178 = vld [vmem:[%s1 + $0xe0] sm:$0xf]
    %v179 = vld [vmem:[%s1 + $0xe4] sm:$0xf]
    %v180 = vld [vmem:[%s1 + $0xe8] sm:$0xf]
    %v181 = vld [vmem:[%s1 + $0xec] sm:$0xf]
    %v182 = vld [vmem:[%s1 + $0xf0] sm:$0xf]
    %v183 = vld [vmem:[%s1 + $0xf4] sm:$0xf]
    %v184 = vld [vmem:[%s1 + $0xf8] sm:$0xf]
    %v185 = vld [vmem:[%s1 + $0xfc] sm:$0xf]
    %v186 = vld [vmem:[%s1 + $0x100] sm:$0xf]
    %v187 = vld [vmem:[%s1 + $0x104] sm:$0xf]
    %v188 = vld [vmem:[%s1 + $0x108] sm:$0xf]
    %v189 = vld [vmem:[%s1 + $0x10c] sm:$0xf]
    %v190 = vld [vmem:[%s1 + $0x110] sm:$0xf]
    %v191 = vld [vmem:[%s1 + $0x114] sm:$0xf]
    %v192 = vld [vmem:[%s1 + $0x118] sm:$0xf]
    %v193 = vld [vmem:[%s1 + $0x11c] sm:$0xf]
    %v194 = vld [vmem:[%s1 + $0x120] sm:$0xf]
    %v195 = vld [vmem:[%s1 + $0x124] sm:$0xf]
    %v196 = vld [vmem:[%s1 + $0x128] sm:$0xf]
    %v197 = vld [vmem:[%s1 + $0x12c] sm:$0xf]
    %v198 = vld [vmem:[%s1 + $0x130] sm:$0xf]
    %v199 = vld [vmem:[%s1 + $0x134] sm:$0xf]
    %v200 = vld [vmem:[%s1 + $0x138] sm:$0xf]
    %v201 = vld [vmem:[%s1 + $0x13c] sm:$0xf]
    %v202 = vld [vmem:[%s1 + $0x140] sm:$0xf]
    %v203 = vld [vmem:[%s1 + $0x144] sm:$0xf]
    %v204 = vld [vmem:[%s1 + $0x148] sm:$0xf]
    %v205 = vld [vmem:[%s1 + $0x14c] sm:$0xf]
    %v206 = vld [vmem:[%s1 + $0x150] sm:$0xf]
    %v207 = vld [vmem:[%s1 + $0x154] sm:$0xf]
    %v208 = vld [vmem:[%s1 + $0x158] sm:$0xf]
    %v209 = vld [vmem:[%s1 + $0x15c] sm:$0xf]
    %v210 = vld [vmem:[%s1 + $0x160] sm:$0xf]
    %v211 = vld [vmem:[%s1 + $0x164] sm:$0xf]
    %v212 = vld [vmem:[%s1 + $0x168] sm:$0xf]
    %v213 = vld [vmem:[%s1 + $0x16c] sm:$0xf]
    %v214 = vld [vmem:[%s1 + $0x170] sm:$0xf]
    %v215 = vld [vmem:[%s1 + $0x174] sm:$0xf]
    %v216 = vld [vmem:[%s1 + $0x178] sm:$0xf]
    %v217 = vld [vmem:[%s1 + $0x17c] sm:$0xf]
    %v218 = vld [vmem:[%s1 + $0x180] sm:$0xf]
    %v219 = vld [vmem:[%s1 + $0x184] sm:$0xf]
    %v220 = vld [vmem:[%s1 + $0x188] sm:$0xf]
    %v221 = vld [vmem:[%s1 + $0x18c] sm:$0xf]
    %v222 = vld [vmem:[%s1 + $0x190] sm:$0xf]
    %v223 = vld [vmem:[%s1 + $0x194] sm:$0xf]
    %v224 = vld [vmem:[%s1 + $0x198] sm:$0xf]
    %v225 = vld [vmem:[%s1 + $0x19c] sm:$0xf]
    %v226 = vld [vmem:[%s1 + $0x1a0] sm:$0xf]
    %v227 = vld [vmem:[%s1 + $0x1a4] sm:$0xf]
    %v228 = vld [vmem:[%s1 + $0x1a8] sm:$0xf]
    %v229 = vld [vmem:[%s1 + $0x1ac] sm:$0xf]
    %v230 = vld [vmem:[%s1 + $0x1b0] sm:$0xf]
    %v231 = vld [vmem:[%s1 + $0x1b4] sm:$0xf]
    %v232 = vld [vmem:[%s1 + $0x1b8] sm:$0xf]
    %v233 = vld [vmem:[%s1 + $0x1bc] sm:$0xf]
    %v234 = vld [vmem:[%s1 + $0x1c0] sm:$0xf]
    %v235 = vld [vmem:[%s1 + $0x1c4] sm:$0xf]
    %v236 = vld [vmem:[%s1 + $0x1c8] sm:$0xf]
    %v237 = vld [vmem:[%s1 + $0x1cc] sm:$0xf]
    %v238 = vld [vmem:[%s1 + $0x1d0] sm:$0xf]
    %v239 = vld [vmem:[%s1 + $0x1d4] sm:$0xf]
    %v240 = vld [vmem:[%s1 + $0x1d8] sm:$0xf]
    %v241 = vld [vmem:[%s1 + $0x1dc] sm:$0xf]
    %v242 = vld [vmem:[%s1 + $0x1e0] sm:$0xf]
    %v243 = vld [vmem:[%s1 + $0x1e4] sm:$0xf]
    %v244 = vld [vmem:[%s1 + $0x1e8] sm:$0xf]
    %v245 = vld [vmem:[%s1 + $0x1ec] sm:$0xf]
    %v246 = vld [vmem:[%s1 + $0x1f0] sm:$0xf]
    %v247 = vld [vmem:[%s1 + $0x1f4] sm:$0xf]
    %v248 = vld [vmem:[%s1 + $0x1f8] sm:$0xf]
    %v249 = vld [vmem:[%s1 + $0x1fc] sm:$0xf]
    %v250 = vld [vmem:[%s2] sm:$0x1]
    %v252 = vperm.slane %v250, 0
    %v382 = vunpack.c.l.b16 %v122
    %v383 = vunpack.c.l.b16 %v123
    %v384 = vunpack.c.l.b16 %v124
    %v385 = vunpack.c.l.b16 %v125
    %v386 = vunpack.c.l.b16 %v126
    %v387 = vunpack.c.l.b16 %v127
    %v388 = vunpack.c.l.b16 %v128
    %v389 = vunpack.c.l.b16 %v129
    %v390 = vunpack.c.l.b16 %v130
    %v391 = vunpack.c.l.b16 %v131
    %v392 = vunpack.c.l.b16 %v132
    %v393 = vunpack.c.l.b16 %v133
    %v394 = vunpack.c.l.b16 %v134
    %v395 = vunpack.c.l.b16 %v135
    %v396 = vunpack.c.l.b16 %v136
    %v397 = vunpack.c.l.b16 %v137
    %v398 = vunpack.c.l.b16 %v138
    %v399 = vunpack.c.l.b16 %v139
    %v400 = vunpack.c.l.b16 %v140
    %v401 = vunpack.c.l.b16 %v141
    %v402 = vunpack.c.l.b16 %v142
    %v403 = vunpack.c.l.b16 %v143
    %v404 = vunpack.c.l.b16 %v144
    %v405 = vunpack.c.l.b16 %v145
    %v406 = vunpack.c.l.b16 %v146
    %v407 = vunpack.c.l.b16 %v147
    %v408 = vunpack.c.l.b16 %v148
    %v409 = vunpack.c.l.b16 %v149
    %v410 = vunpack.c.l.b16 %v150
    %v411 = vunpack.c.l.b16 %v151
    %v412 = vunpack.c.l.b16 %v152
    %v413 = vunpack.c.l.b16 %v153
    %v414 = vunpack.c.l.b16 %v154
    %v415 = vunpack.c.l.b16 %v155
    %v416 = vunpack.c.l.b16 %v156
    %v417 = vunpack.c.l.b16 %v157
    %v418 = vunpack.c.l.b16 %v158
    %v419 = vunpack.c.l.b16 %v159
    %v420 = vunpack.c.l.b16 %v160
    %v421 = vunpack.c.l.b16 %v161
    %v422 = vunpack.c.l.b16 %v162
    %v423 = vunpack.c.l.b16 %v163
    %v424 = vunpack.c.l.b16 %v164
    %v425 = vunpack.c.l.b16 %v165
    %v426 = vunpack.c.l.b16 %v166
    %v427 = vunpack.c.l.b16 %v167
    %v428 = vunpack.c.l.b16 %v168
    %v429 = vunpack.c.l.b16 %v169
    %v430 = vunpack.c.l.b16 %v170
    %v431 = vunpack.c.l.b16 %v171
    %v432 = vunpack.c.l.b16 %v172
    %v433 = vunpack.c.l.b16 %v173
    %v434 = vunpack.c.l.b16 %v174
    %v435 = vunpack.c.l.b16 %v175
    %v436 = vunpack.c.l.b16 %v176
    %v437 = vunpack.c.l.b16 %v177
    %v438 = vunpack.c.l.b16 %v178
    %v439 = vunpack.c.l.b16 %v179
    %v440 = vunpack.c.l.b16 %v180
    %v441 = vunpack.c.l.b16 %v181
    %v442 = vunpack.c.l.b16 %v182
    %v443 = vunpack.c.l.b16 %v183
    %v444 = vunpack.c.l.b16 %v184
    %v445 = vunpack.c.l.b16 %v185
    %v446 = vunpack.c.l.b16 %v186
    %v447 = vunpack.c.l.b16 %v187
    %v448 = vunpack.c.l.b16 %v188
    %v449 = vunpack.c.l.b16 %v189
    %v450 = vunpack.c.l.b16 %v190
    %v451 = vunpack.c.l.b16 %v191
    %v452 = vunpack.c.l.b16 %v192
    %v453 = vunpack.c.l.b16 %v193
    %v454 = vunpack.c.l.b16 %v194
    %v455 = vunpack.c.l.b16 %v195
    %v456 = vunpack.c.l.b16 %v196
    %v457 = vunpack.c.l.b16 %v197
    %v458 = vunpack.c.l.b16 %v198
    %v459 = vunpack.c.l.b16 %v199
    %v460 = vunpack.c.l.b16 %v200
    %v461 = vunpack.c.l.b16 %v201
    %v462 = vunpack.c.l.b16 %v202
    %v463 = vunpack.c.l.b16 %v203
    %v464 = vunpack.c.l.b16 %v204
    %v465 = vunpack.c.l.b16 %v205
    %v466 = vunpack.c.l.b16 %v206
    %v467 = vunpack.c.l.b16 %v207
    %v468 = vunpack.c.l.b16 %v208
    %v469 = vunpack.c.l.b16 %v209
    %v470 = vunpack.c.l.b16 %v210
    %v471 = vunpack.c.l.b16 %v211
    %v472 = vunpack.c.l.b16 %v212
    %v473 = vunpack.c.l.b16 %v213
    %v474 = vunpack.c.l.b16 %v214
    %v475 = vunpack.c.l.b16 %v215
    %v476 = vunpack.c.l.b16 %v216
    %v477 = vunpack.c.l.b16 %v217
    %v478 = vunpack.c.l.b16 %v218
    %v479 = vunpack.c.l.b16 %v219
    %v480 = vunpack.c.l.b16 %v220
    %v481 = vunpack.c.l.b16 %v221
    %v482 = vunpack.c.l.b16 %v222
    %v483 = vunpack.c.l.b16 %v223
    %v484 = vunpack.c.l.b16 %v224
    %v485 = vunpack.c.l.b16 %v225
    %v486 = vunpack.c.l.b16 %v226
    %v487 = vunpack.c.l.b16 %v227
    %v488 = vunpack.c.l.b16 %v228
    %v489 = vunpack.c.l.b16 %v229
    %v490 = vunpack.c.l.b16 %v230
    %v491 = vunpack.c.l.b16 %v231
    %v492 = vunpack.c.l.b16 %v232
    %v493 = vunpack.c.l.b16 %v233
    %v494 = vunpack.c.l.b16 %v234
    %v495 = vunpack.c.l.b16 %v235
    %v496 = vunpack.c.l.b16 %v236
    %v497 = vunpack.c.l.b16 %v237
    %v498 = vunpack.c.l.b16 %v238
    %v499 = vunpack.c.l.b16 %v239
    %v500 = vunpack.c.l.b16 %v240
    %v501 = vunpack.c.l.b16 %v241
    %v502 = vunpack.c.l.b16 %v242
    %v503 = vunpack.c.l.b16 %v243
    %v504 = vunpack.c.l.b16 %v244
    %v505 = vunpack.c.l.b16 %v245
    %v506 = vunpack.c.l.b16 %v246
    %v507 = vunpack.c.l.b16 %v247
    %v508 = vunpack.c.l.b16 %v248
    %v509 = vunpack.c.l.b16 %v249
    %v510 = vpack.c.b16 %v383, %v382
    %v511 = vpack.c.b16 %v385, %v384
    %v512 = vpack.c.b16 %v387, %v386
    %v513 = vpack.c.b16 %v389, %v388
    %v514 = vpack.c.b16 %v391, %v390
    %v515 = vpack.c.b16 %v393, %v392
    %v516 = vpack.c.b16 %v395, %v394
    %v517 = vpack.c.b16 %v397, %v396
    %v518 = vpack.c.b16 %v399, %v398
    %v519 = vpack.c.b16 %v401, %v400
    %v520 = vpack.c.b16 %v403, %v402
    %v521 = vpack.c.b16 %v405, %v404
    %v522 = vpack.c.b16 %v407, %v406
    %v523 = vpack.c.b16 %v409, %v408
    %v524 = vpack.c.b16 %v411, %v410
    %v525 = vpack.c.b16 %v413, %v412
    %v526 = vpack.c.b16 %v415, %v414
    %v527 = vpack.c.b16 %v417, %v416
    %v528 = vpack.c.b16 %v419, %v418
    %v529 = vpack.c.b16 %v421, %v420
    %v530 = vpack.c.b16 %v423, %v422
    %v531 = vpack.c.b16 %v425, %v424
    %v532 = vpack.c.b16 %v427, %v426
    %v533 = vpack.c.b16 %v429, %v428
    %v534 = vpack.c.b16 %v431, %v430
    %v535 = vpack.c.b16 %v433, %v432
    %v536 = vpack.c.b16 %v435, %v434
    %v537 = vpack.c.b16 %v437, %v436
    %v538 = vpack.c.b16 %v439, %v438
    %v539 = vpack.c.b16 %v441, %v440
    %v540 = vpack.c.b16 %v443, %v442
    %v541 = vpack.c.b16 %v445, %v444
    %v542 = vpack.c.b16 %v447, %v446
    %v543 = vpack.c.b16 %v449, %v448
    %v544 = vpack.c.b16 %v451, %v450
    %v545 = vpack.c.b16 %v453, %v452
    %v546 = vpack.c.b16 %v455, %v454
    %v547 = vpack.c.b16 %v457, %v456
    %v548 = vpack.c.b16 %v459, %v458
    %v549 = vpack.c.b16 %v461, %v460
    %v550 = vpack.c.b16 %v463, %v462
    %v551 = vpack.c.b16 %v465, %v464
    %v552 = vpack.c.b16 %v467, %v466
    %v553 = vpack.c.b16 %v469, %v468
    %v554 = vpack.c.b16 %v471, %v470
    %v555 = vpack.c.b16 %v473, %v472
    %v556 = vpack.c.b16 %v475, %v474
    %v557 = vpack.c.b16 %v477, %v476
    %v558 = vpack.c.b16 %v479, %v478
    %v559 = vpack.c.b16 %v481, %v480
    %v560 = vpack.c.b16 %v483, %v482
    %v561 = vpack.c.b16 %v485, %v484
    %v562 = vpack.c.b16 %v487, %v486
    %v563 = vpack.c.b16 %v489, %v488
    %v564 = vpack.c.b16 %v491, %v490
    %v565 = vpack.c.b16 %v493, %v492
    %v566 = vpack.c.b16 %v495, %v494
    %v567 = vpack.c.b16 %v497, %v496
    %v568 = vpack.c.b16 %v499, %v498
    %v569 = vpack.c.b16 %v501, %v500
    %v570 = vpack.c.b16 %v503, %v502
    %v571 = vpack.c.b16 %v505, %v504
    %v572 = vpack.c.b16 %v507, %v506
    %v573 = vpack.c.b16 %v509, %v508
    %638 = vmatpush.bf16.msra.mxu0 %v517
    %639 = vmatpush.bf16.msra.mxu0 %v516
    %640 = vmatpush.bf16.msra.mxu0 %v515
    %641 = vmatpush.bf16.msra.mxu0 %v514
    %642 = vmatpush.bf16.msra.mxu0 %v513
    %643 = vmatpush.bf16.msra.mxu0 %v512
    %644 = vmatpush.bf16.msra.mxu0 %v511
    %645 = vmatpush.bf16.msra.mxu0 %v510
    %646 = vmatmul.bf16.gmra.mxu0 %v114
    %v647 = vpop.f32.mrf.mxu0
    %v648 = vadd.f32 %v252, %v647
    %v649 = vpop.f32.mrf.mxu0
    %v650 = vadd.f32 %v252, %v649
    %651 = vdwg.mxu0
    %652 = vmatpush.bf16.msra.mxu0 %v525
    %653 = vmatpush.bf16.msra.mxu0 %v524
    %654 = vmatpush.bf16.msra.mxu0 %v523
    %655 = vmatpush.bf16.msra.mxu0 %v522
    %656 = vmatpush.bf16.msra.mxu0 %v521
    %657 = vmatpush.bf16.msra.mxu0 %v520
    %658 = vmatpush.bf16.msra.mxu0 %v519
    %659 = vmatpush.bf16.msra.mxu0 %v518
    %660 = vmatmul.bf16.gmra.mxu0 %v115
    %v661 = vpop.f32.mrf.mxu0
    %v662 = vadd.f32 %v648, %v661
    %v663 = vpop.f32.mrf.mxu0
    %v664 = vadd.f32 %v650, %v663
    %665 = vdwg.mxu0
    %666 = vmatpush.bf16.msra.mxu0 %v533
    %667 = vmatpush.bf16.msra.mxu0 %v532
    %668 = vmatpush.bf16.msra.mxu0 %v531
    %669 = vmatpush.bf16.msra.mxu0 %v530
    %670 = vmatpush.bf16.msra.mxu0 %v529
    %671 = vmatpush.bf16.msra.mxu0 %v528
    %672 = vmatpush.bf16.msra.mxu0 %v527
    %673 = vmatpush.bf16.msra.mxu0 %v526
    %674 = vmatmul.bf16.gmra.mxu0 %v116
    %v675 = vpop.f32.mrf.mxu0
    %v676 = vadd.f32 %v662, %v675
    %v677 = vpop.f32.mrf.mxu0
    %v678 = vadd.f32 %v664, %v677
    %679 = vdwg.mxu0
    %680 = vmatpush.bf16.msra.mxu0 %v541
    %681 = vmatpush.bf16.msra.mxu0 %v540
    %682 = vmatpush.bf16.msra.mxu0 %v539
    %683 = vmatpush.bf16.msra.mxu0 %v538
    %684 = vmatpush.bf16.msra.mxu0 %v537
    %685 = vmatpush.bf16.msra.mxu0 %v536
    %686 = vmatpush.bf16.msra.mxu0 %v535
    %687 = vmatpush.bf16.msra.mxu0 %v534
    %688 = vmatmul.bf16.gmra.mxu0 %v117
    %v689 = vpop.f32.mrf.mxu0
    %v690 = vadd.f32 %v676, %v689
    %v691 = vpop.f32.mrf.mxu0
    %v692 = vadd.f32 %v678, %v691
    %693 = vdwg.mxu0
    %694 = vmatpush.bf16.msra.mxu0 %v549
    %695 = vmatpush.bf16.msra.mxu0 %v548
    %696 = vmatpush.bf16.msra.mxu0 %v547
    %697 = vmatpush.bf16.msra.mxu0 %v546
    %698 = vmatpush.bf16.msra.mxu0 %v545
    %699 = vmatpush.bf16.msra.mxu0 %v544
    %700 = vmatpush.bf16.msra.mxu0 %v543
    %701 = vmatpush.bf16.msra.mxu0 %v542
    %702 = vmatmul.bf16.gmra.mxu0 %v118
    %v703 = vpop.f32.mrf.mxu0
    %v704 = vadd.f32 %v690, %v703
    %v705 = vpop.f32.mrf.mxu0
    %v706 = vadd.f32 %v692, %v705
    %707 = vdwg.mxu0
    %708 = vmatpush.bf16.msra.mxu0 %v557
    %709 = vmatpush.bf16.msra.mxu0 %v556
    %710 = vmatpush.bf16.msra.mxu0 %v555
    %711 = vmatpush.bf16.msra.mxu0 %v554
    %712 = vmatpush.bf16.msra.mxu0 %v553
    %713 = vmatpush.bf16.msra.mxu0 %v552
    %714 = vmatpush.bf16.msra.mxu0 %v551
    %715 = vmatpush.bf16.msra.mxu0 %v550
    %716 = vmatmul.bf16.gmra.mxu0 %v119
    %v717 = vpop.f32.mrf.mxu0
    %v718 = vadd.f32 %v704, %v717
    %v719 = vpop.f32.mrf.mxu0
    %v720 = vadd.f32 %v706, %v719
    %721 = vdwg.mxu0
    %722 = vmatpush.bf16.msra.mxu0 %v565
    %723 = vmatpush.bf16.msra.mxu0 %v564
    %724 = vmatpush.bf16.msra.mxu0 %v563
    %725 = vmatpush.bf16.msra.mxu0 %v562
    %726 = vmatpush.bf16.msra.mxu0 %v561
    %727 = vmatpush.bf16.msra.mxu0 %v560
    %728 = vmatpush.bf16.msra.mxu0 %v559
    %729 = vmatpush.bf16.msra.mxu0 %v558
    %730 = vmatmul.bf16.gmra.mxu0 %v120
    %v731 = vpop.f32.mrf.mxu0
    %v732 = vadd.f32 %v718, %v731
    %v733 = vpop.f32.mrf.mxu0
    %v734 = vadd.f32 %v720, %v733
    %735 = vdwg.mxu0
    %736 = vmatpush.bf16.msra.mxu0 %v573
    %737 = vmatpush.bf16.msra.mxu0 %v572
    %738 = vmatpush.bf16.msra.mxu0 %v571
    %739 = vmatpush.bf16.msra.mxu0 %v570
    %740 = vmatpush.bf16.msra.mxu0 %v569
    %741 = vmatpush.bf16.msra.mxu0 %v568
    %742 = vmatpush.bf16.msra.mxu0 %v567
    %743 = vmatpush.bf16.msra.mxu0 %v566
    %744 = vmatmul.bf16.gmra.mxu0 %v121
    %v745 = vpop.f32.mrf.mxu0
    %v746 = vadd.f32 %v732, %v745
    %v747 = vpop.f32.mrf.mxu0
    %v748 = vadd.f32 %v734, %v747
    %749 = vdwg.mxu0
    %v750 = vmax.f32 %v746, 0.0
    %v751 = vmax.f32 %v748, 0.0
    %v752 = vld [vmem:[%s3] sm:$0xff]
    %v753 = vld [vmem:[%s3 + $0x8] sm:$0xff]
    %v754 = vld [vmem:[%s3 + $0x10] sm:$0xff]
    %v755 = vld [vmem:[%s3 + $0x18] sm:$0xff]
    %v756 = vld [vmem:[%s4] sm:$0x1]
    %v758 = vperm.slane %v756, 0
    %vm760 = vcmask 261120
    %v762 = vsel %vm760, %v750, 0
    %v765 = vsel %vm760, %v751, 0
    %767 = vmatpush.msra.mxu0 0.0
    %768 = vmatpush.msra.mxu0 0.0
    %769 = vmatpush.msra.mxu0 0.0
    %770 = vmatpush.msra.mxu0 0.0
    %771 = vmatpush.msra.mxu0 0.0
    %772 = vmatpush.msra.mxu0 0.0
    %773 = vmatpush.msra.mxu0 0.0
    %774 = vmatpush.msra.mxu0 0.0
    %775 = vmatpush.msra.mxu0 0.0
    %776 = vmatpush.msra.mxu0 0.0
    %777 = vmatpush.msra.mxu0 0.0
    %778 = vmatpush.msra.mxu0 0.0
    %779 = vmatpush.msra.mxu0 %v755
    %780 = vmatpush.msra.mxu0 %v754
    %781 = vmatpush.msra.mxu0 %v753
    %782 = vmatpush.msra.mxu0 %v752
    %783 = vmatmul.f32.gmra.mxu0 %v762
    %v784 = vpop.f32.mrf.mxu0
    %v785 = vadd.f32 %v758, %v784
    %786 = vmatmul.f32.gmra.mxu0 %v765
    %v787 = vpop.f32.mrf.mxu0
    %v788 = vadd.f32 %v758, %v787
    %789 = vdwg.mxu0
    %v790 = vmax.f32 %v785, 0.0
    %v791 = vmax.f32 %v788, 0.0
    %v792 = vld [vmem:[%s5] sm:$0xff]
    %v793 = vld [vmem:[%s5 + $0x8] sm:$0xff]
    %v794 = vld [vmem:[%s6] sm:$0x1]
    %v796 = vperm.slane %v794, 0
    %vm798 = vcmask 130048
    %v800 = vsel %vm798, %v790, 0
    %v803 = vsel %vm798, %v791, 0
    %805 = vmatpush.msra.mxu0 0.0
    %806 = vmatpush.msra.mxu0 0.0
    %807 = vmatpush.msra.mxu0 0.0
    %808 = vmatpush.msra.mxu0 0.0
    %809 = vmatpush.msra.mxu0 0.0
    %810 = vmatpush.msra.mxu0 0.0
    %811 = vmatpush.msra.mxu0 0.0
    %812 = vmatpush.msra.mxu0 0.0
    %813 = vmatpush.msra.mxu0 0.0
    %814 = vmatpush.msra.mxu0 0.0
    %815 = vmatpush.msra.mxu0 0.0
    %816 = vmatpush.msra.mxu0 0.0
    %817 = vmatpush.msra.mxu0 0.0
    %818 = vmatpush.msra.mxu0 0.0
    %819 = vmatpush.msra.mxu0 %v793
    %820 = vmatpush.msra.mxu0 %v792
    %821 = vmatmul.f32.gmra.mxu0 %v800
    %v822 = vpop.f32.mrf.mxu0
    %v823 = vadd.f32 %v796, %v822
    %824 = vmatmul.f32.gmra.mxu0 %v803
    %v825 = vpop.f32.mrf.mxu0
    %v826 = vadd.f32 %v796, %v825
    %827 = vdwg.mxu0
    %828 = vst [vmem:[#allocation2] sm:$0xff] %v823
    %829 = vst [vmem:[#allocation2 + $0x8] sm:$0xff] %v826
    // Predicated region
    $region30: #{tpu_custom_call.1} parent=1 // pred_check
      _
    $region31: #{tpu_custom_call.1} parent=1 // pred_check_branch
      %831 = sbr.rel (0) target = $region33
    $region32: #{tpu_custom_call.1} parent=1 // pred_region
      %833 = vsyncadd [#allocation3], 224
      %s834 = sshll.u32 [#allocation2], 4
      %s835 = int_to_ptr.vmem [resolvable:$true] %s834
      %s836 = sshll.u32 %s7, 4
      %s837 = int_to_ptr.hbm [resolvable:$true] %s836
      %842 = dma.vmem_to_hbm [thread:$0]  %s835, 32, %s837, [#allocation3], 32, 32, 2
    $region33: #{tpu_custom_call.1} parent=1 // pred_fallthru
      _
    // Predicated region
    $region34: #{tpu_custom_call.1} parent=1 // pred_check
      _
    $region35: #{tpu_custom_call.1} parent=1 // pred_check_branch
      %844 = sbr.rel (0) target = $region37
    $region36: #{tpu_custom_call.1} parent=1 // pred_region
      %846 = dma.done [#allocation3], 256
    $region37: #{tpu_custom_call.1} parent=1 // pred_fallthru
      _
    %847 = vsyncpa [#allocation3], 1

</llo_original>
